<compile_context>
chip_gen: v5e
topology: v5e:2x2
jax: 0.10.0
libtpu: 0.0.40
codegen_flags: <defaults>
</compile_context>

<pallas_src>
import math
import functools

import jax
import jax.numpy as jnp
from jax.experimental import pallas as pl
from jax.experimental.pallas import tpu as pltpu


def _round_up(n, m):
    return ((n + m - 1) // m) * m


# ---------------------------------------------------------------------------
# Kernel
# ---------------------------------------------------------------------------
def _gdu_kernel(x_ref, z_ref, h_ref,
                wxa_ref, wza_ref, wha_ref, ba_ref,
                wzt_ref, wht_ref,
                out_ref, *, z_sz, h_sz, out_sz):
    x = x_ref[...]                                  # (bB, x_sz) f32
    z = z_ref[...]                                  # (bB, z_sz) f32
    h = h_ref[...]                                  # (bB, h_sz) f32

    gate_w = 2 * out_sz + z_sz + h_sz               # width of the gate slab

    # ---- phase 1: all x/z/h projections in one fused column slab -----------
    # columns: [ g | r | f | e | o1 | o2 | o3 | o4 ]   (bf16 operands, f32 acc)
    preA = (jnp.dot(x.astype(jnp.bfloat16), wxa_ref[...],
                    preferred_element_type=jnp.float32)
            + jnp.dot(z.astype(jnp.bfloat16), wza_ref[...],
                      preferred_element_type=jnp.float32)
            + jnp.dot(h.astype(jnp.bfloat16), wha_ref[...],
                      preferred_element_type=jnp.float32)
            + ba_ref[...])

    # f / e gates (sigmoid(x) == 0.5*tanh(0.5*x)+0.5 — single EUP op)
    fe = 0.5 * jnp.tanh(0.5 * preA[:, 2 * out_sz:gate_w]) + 0.5
    f = fe[:, :z_sz]
    e = fe[:, z_sz:]

    z_t = (f * z).astype(jnp.bfloat16)
    h_t = (e * h).astype(jnp.bfloat16)

    # ---- phase 2: z~/h~ projections; identical column layout => aligned add
    pre = preA + (jnp.dot(z_t, wzt_ref[...], preferred_element_type=jnp.float32)
                  + jnp.dot(h_t, wht_ref[...], preferred_element_type=jnp.float32))

    gr = 0.5 * jnp.tanh(0.5 * pre[:, :2 * out_sz]) + 0.5
    g = gr[:, :out_sz]
    r = gr[:, out_sz:]

    cands = jnp.tanh(pre[:, gate_w:])               # [o1|o2|o3|o4], one slab
    o1 = cands[:, :out_sz]
    o2 = cands[:, out_sz:2 * out_sz]
    o3 = cands[:, 2 * out_sz:3 * out_sz]
    o4 = cands[:, 3 * out_sz:]

    out_ref[...] = (r * (g * o1 + (1.0 - g) * o2)
                    + (1.0 - r) * (g * o3 + (1.0 - g) * o4)).astype(out_ref.dtype)


# ---------------------------------------------------------------------------
# Host-side weight packing (done once, not per call)
# ---------------------------------------------------------------------------
def pack_gdu_params(p, *, mxu_dtype=jnp.bfloat16):
    """Pack the 24 raw GDU parameters into 5 bf16 weight slabs + 1 f32 bias row.

    Shared column layout for every slab (width NA = 6*out + z + h):
        [ g(out) | r(out) | f(z_sz) | e(h_sz) | o1(out) | o2(out) | o3(out) | o4(out) ]
    """
    x_sz = p["W_fx"].shape[0]
    z_sz = p["W_fz"].shape[0]
    h_sz = p["W_fh"].shape[0]
    out_sz = p["W_gx"].shape[1]
    zmat = lambda r, c: jnp.zeros((r, c), jnp.float32)

    def rows(W_g, W_r, W_f, W_e, W_o1, W_o2, W_o3, W_o4):
        return jnp.concatenate([W_g, W_r, W_f, W_e, W_o1, W_o2, W_o3, W_o4], axis=1)

    # x / z / h row-slabs (phase 1).  Candidate columns:
    #   o1 = x@Wux + z~@Wuz + h~@Wuh     o2 = x@Wux + z@Wuz + h~@Wuh
    #   o3 = x@Wux + z~@Wuz + h@Wuh      o4 = x@Wux + z@Wuz + h@Wuh
    WxA = rows(p["W_gx"], p["W_rx"], p["W_fx"], p["W_ex"],
               p["W_ux"], p["W_ux"], p["W_ux"], p["W_ux"])
    WzA = rows(p["W_gz"], p["W_rz"], p["W_fz"], p["W_ez"],
               zmat(z_sz, out_sz), p["W_uz"], zmat(z_sz, out_sz), p["W_uz"])
    WhA = rows(p["W_gh"], p["W_rh"], p["W_fh"], p["W_eh"],
               zmat(h_sz, out_sz), zmat(h_sz, out_sz), p["W_uh"], p["W_uh"])

    # z~ / h~ row-slabs (phase 2); zero columns for f/e keep the layout aligned.
    WzT = rows(p["W_gz_tilde"], p["W_rz_tilde"], zmat(z_sz, z_sz), zmat(z_sz, h_sz),
               p["W_uz"], zmat(z_sz, out_sz), p["W_uz"], zmat(z_sz, out_sz))
    WhT = rows(p["W_gh_tilde"], p["W_rh_tilde"], zmat(h_sz, z_sz), zmat(h_sz, h_sz),
               p["W_uh"], p["W_uh"], zmat(h_sz, out_sz), zmat(h_sz, out_sz))

    bA = jnp.concatenate([p["b_g"], p["b_r"], p["b_f"], p["b_e"],
                          p["b_u"], p["b_u"], p["b_u"], p["b_u"]], axis=1)

    return {"WxA": WxA.astype(mxu_dtype), "WzA": WzA.astype(mxu_dtype),
            "WhA": WhA.astype(mxu_dtype), "bA": bA.astype(jnp.float32),
            "WzT": WzT.astype(mxu_dtype), "WhT": WhT.astype(mxu_dtype)}


# ---------------------------------------------------------------------------
# Wrapper
# ---------------------------------------------------------------------------
@jax.jit
def gdu_forward(x, z, h, packed):
    B, x_sz = x.shape
    z_sz = z.shape[1]
    h_sz = h.shape[1]
    NA = packed["bA"].shape[1]
    out_sz = (NA - z_sz - h_sz) // 6

    # ---- batch tiling -------------------------------------------------------
    # Per-row VMEM working set is <1 KB, so 2048-row blocks are safe under the
    # default scoped-VMEM limit on every generation (16 MiB v5e, 32 MiB
    # v6e/v7x).  For large batches use an even number (>=2) of grid steps so
    # the "parallel" axis can shard across v7x's two TensorCores.
    MAX_BLOCK_B = 2048
    if B <= 512:
        block_b = _round_up(B, 8)                       # single latency-path block
    else:
        n_blocks = max(2, pl.cdiv(B, MAX_BLOCK_B))
        if n_blocks % 2:
            n_blocks += 1
        block_b = _round_up(pl.cdiv(B, n_blocks), 8)
    B_pad = _round_up(B, block_b)
    if B_pad != B:
        pad = B_pad - B
        x = jnp.pad(x, ((0, pad), (0, 0)))
        z = jnp.pad(z, ((0, pad), (0, 0)))
        h = jnp.pad(h, ((0, pad), (0, 0)))
    grid = (B_pad // block_b,)

    def act_spec(feat):
        return pl.BlockSpec((block_b, feat), lambda i: (i, 0))

    def const_spec(arr):
        # Constant index_map => weights/biases DMA'd once, VMEM-resident across grid.
        return pl.BlockSpec(arr.shape, lambda i: (0, 0))

    kernel = functools.partial(_gdu_kernel, z_sz=z_sz, h_sz=h_sz, out_sz=out_sz)
    out = pl.pallas_call(
        kernel,
        out_shape=jax.ShapeDtypeStruct((B_pad, out_sz), jnp.float32),
        grid=grid,
        in_specs=[act_spec(x_sz), act_spec(z_sz), act_spec(h_sz),
                  const_spec(packed["WxA"]), const_spec(packed["WzA"]),
                  const_spec(packed["WhA"]), const_spec(packed["bA"]),
                  const_spec(packed["WzT"]), const_spec(packed["WhT"])],
        out_specs=act_spec(out_sz),
        compiler_params=pltpu.CompilerParams(dimension_semantics=("parallel",)),
    )(x, z, h,
      packed["WxA"], packed["WzA"], packed["WhA"], packed["bA"],
      packed["WzT"], packed["WhT"])

    return out[:B] if B_pad != B else out


# ---------------------------------------------------------------------------
# Raw parameter init (mirrors torch uniform(-1/sqrt(fan), 1/sqrt(fan)))
# ---------------------------------------------------------------------------
def init_gdu_params(key, x_sz, z_sz, h_sz, out_sz):
    shapes = {
        "W_fx": (x_sz, z_sz), "W_fz": (z_sz, z_sz), "W_fh": (h_sz, z_sz),
        "b_f": (z_sz,),
        "W_ex": (x_sz, h_sz), "W_ez": (z_sz, h_sz), "W_eh": (h_sz, h_sz),
        "b_e": (h_sz,),
        "W_gx": (x_sz, out_sz), "W_gz": (z_sz, out_sz), "W_gh": (h_sz, out_sz),
        "W_gz_tilde": (z_sz, out_sz), "W_gh_tilde": (h_sz, out_sz),
        "b_g": (out_sz,),
        "W_rx": (x_sz, out_sz), "W_rz": (z_sz, out_sz), "W_rh": (h_sz, out_sz),
        "W_rz_tilde": (z_sz, out_sz), "W_rh_tilde": (h_sz, out_sz),
        "b_r": (out_sz,),
        "W_ux": (x_sz, out_sz), "W_uz": (z_sz, out_sz), "W_uh": (h_sz, out_sz),
        "b_u": (out_sz,),
    }
    params = {}
    keys = jax.random.split(key, len(shapes))
    for k, (name, shp) in zip(keys, sorted(shapes.items())):
        stdv = 1.0 / math.sqrt(shp[1] if len(shp) >= 2 else shp[0])
        w = jax.random.uniform(k, shp, jnp.float32, minval=-stdv, maxval=stdv)
        if len(shp) == 1:
            w = w.reshape(1, -1)   # [1, features] so it broadcasts
        params[name] = w
    return params


# ---------------------------------------------------------------------------
# Pure-JAX references
# ---------------------------------------------------------------------------
def gdu_reference(x, z, h, p, mm=None):
    """Mirrors the PyTorch forward; `mm` lets us mimic the kernel's bf16 dots."""
    if mm is None:
        mm = lambda a, w: jnp.dot(a, w)
    sig, tanh = jax.nn.sigmoid, jnp.tanh
    f = sig(mm(x, p["W_fx"]) + mm(z, p["W_fz"]) + mm(h, p["W_fh"]) + p["b_f"])
    z_t = f * z
    e = sig(mm(x, p["W_ex"]) + mm(z, p["W_ez"]) + mm(h, p["W_eh"]) + p["b_e"])
    h_t = e * h
    g = sig(mm(x, p["W_gx"]) + mm(z, p["W_gz"]) + mm(h, p["W_gh"])
            + mm(z_t, p["W_gz_tilde"]) + mm(h_t, p["W_gh_tilde"]) + p["b_g"])
    r = sig(mm(x, p["W_rx"]) + mm(z, p["W_rz"]) + mm(h, p["W_rh"])
            + mm(z_t, p["W_rz_tilde"]) + mm(h_t, p["W_rh_tilde"]) + p["b_r"])
    o1 = tanh(mm(x, p["W_ux"]) + mm(z_t, p["W_uz"]) + mm(h_t, p["W_uh"]) + p["b_u"])
    o2 = tanh(mm(x, p["W_ux"]) + mm(z, p["W_uz"]) + mm(h_t, p["W_uh"]) + p["b_u"])
    o3 = tanh(mm(x, p["W_ux"]) + mm(z_t, p["W_uz"]) + mm(h, p["W_uh"]) + p["b_u"])
    o4 = tanh(mm(x, p["W_ux"]) + mm(z, p["W_uz"]) + mm(h, p["W_uh"]) + p["b_u"])
    return (g * r * o1 + (1 - g) * r * o2
            + g * (1 - r) * o3 + (1 - g) * (1 - r) * o4)


def _bf16_mm(a, w):
    return jnp.dot(a.astype(jnp.bfloat16), w.astype(jnp.bfloat16),
                   preferred_element_type=jnp.float32)


if __name__ == "__main__":
    # batch=8, x_sz=16, z_sz=32, h_sz=32, out_sz=32 (g_sz unused by forward)
    B, x_sz, z_sz, h_sz, out_sz = 8, 16, 32, 32, 32

    key = jax.random.PRNGKey(0)
    kx, kz, kh, kp = jax.random.split(key, 4)
    x = jax.random.normal(kx, (B, x_sz), jnp.float32)
    z = jax.random.normal(kz, (B, z_sz), jnp.float32)
    h = jax.random.normal(kh, (B, h_sz), jnp.float32)

    raw_params = init_gdu_params(kp, x_sz, z_sz, h_sz, out_sz)
    packed = pack_gdu_params(raw_params)          # one-time host-side weight fusion

    out = jax.block_until_ready(gdu_forward(x, z, h, packed))
    assert out.shape == (B, out_sz)
    assert bool(jnp.all(jnp.isfinite(out)))

    # Tight check against a reference using the same bf16-operand / f32-accum dots.
    ref_bf16 = gdu_reference(x, z, h, raw_params, mm=_bf16_mm)
    assert jnp.allclose(out, ref_bf16, atol=2e-3, rtol=2e-3), "mismatch vs bf16-dot reference"

    # Loose sanity check against the exact f32 PyTorch-equivalent math.
    ref_f32 = gdu_reference(x, z, h, raw_params)
    assert jnp.allclose(out, ref_f32, atol=1e-1, rtol=1e-1), "mismatch vs f32 reference"

    print("KERNEL_OK")
</pallas_src>

<mosaic_0001>
module attributes {stable_mosaic.version = 11 : i64} {
  func.func @_gdu_kernel(%arg0: i32, %arg1: memref<8x16xf32, #tpu.memory_space<vmem>>, %arg2: memref<8x32xf32, #tpu.memory_space<vmem>>, %arg3: memref<8x32xf32, #tpu.memory_space<vmem>>, %arg4: memref<16x256xbf16, #tpu.memory_space<vmem>>, %arg5: memref<32x256xbf16, #tpu.memory_space<vmem>>, %arg6: memref<32x256xbf16, #tpu.memory_space<vmem>>, %arg7: memref<1x256xf32, #tpu.memory_space<vmem>>, %arg8: memref<32x256xbf16, #tpu.memory_space<vmem>>, %arg9: memref<32x256xbf16, #tpu.memory_space<vmem>>, %arg10: memref<8x32xf32, #tpu.memory_space<vmem>>) attributes {dimension_semantics = [#tpu.dimension_semantics<parallel>], iteration_bounds = array<i64: 1>, scalar_prefetch = 0 : i64, scratch_operands = 0 : i64, tpu.core_type = #tpu.core_type<tc>, window_params = [{transform_indices = @transform_0, window_bounds = array<i64: 8, 16>}, {transform_indices = @transform_1, window_bounds = array<i64: 8, 32>}, {transform_indices = @transform_2, window_bounds = array<i64: 8, 32>}, {pipeline_mode = #tpu.pipeline_mode<synchronous>, transform_indices = @transform_3, window_bounds = array<i64: 16, 256>}, {pipeline_mode = #tpu.pipeline_mode<synchronous>, transform_indices = @transform_4, window_bounds = array<i64: 32, 256>}, {pipeline_mode = #tpu.pipeline_mode<synchronous>, transform_indices = @transform_5, window_bounds = array<i64: 32, 256>}, {pipeline_mode = #tpu.pipeline_mode<synchronous>, transform_indices = @transform_6, window_bounds = array<i64: 1, 256>}, {pipeline_mode = #tpu.pipeline_mode<synchronous>, transform_indices = @transform_7, window_bounds = array<i64: 32, 256>}, {pipeline_mode = #tpu.pipeline_mode<synchronous>, transform_indices = @transform_8, window_bounds = array<i64: 32, 256>}, {transform_indices = @transform_9, window_bounds = array<i64: 8, 32>}]} {
    %c0 = arith.constant 0 : index
    %c0_0 = arith.constant 0 : index
    %0 = vector.load %arg1[%c0, %c0_0] : memref<8x16xf32, #tpu.memory_space<vmem>>, vector<8x16xf32>
    %c0_1 = arith.constant 0 : index
    %c0_2 = arith.constant 0 : index
    %1 = vector.load %arg2[%c0_1, %c0_2] : memref<8x32xf32, #tpu.memory_space<vmem>>, vector<8x32xf32>
    %c0_3 = arith.constant 0 : index
    %c0_4 = arith.constant 0 : index
    %2 = vector.load %arg3[%c0_3, %c0_4] : memref<8x32xf32, #tpu.memory_space<vmem>>, vector<8x32xf32>
    %3 = arith.truncf %0 : vector<8x16xf32> to vector<8x16xbf16>
    %c0_5 = arith.constant 0 : index
    %c0_6 = arith.constant 0 : index
    %4 = vector.load %arg4[%c0_5, %c0_6] : memref<16x256xbf16, #tpu.memory_space<vmem>>, vector<16x256xbf16>
    %cst = arith.constant dense<0.000000e+00> : vector<8x256xf32>
    %5 = tpu.matmul %3, %4, %cst {dimension_numbers = #tpu.dot_dimension_numbers<[1], [0], [0], [1], [0, 0, 1, 1], [], []>} : vector<8x16xbf16>, vector<16x256xbf16>, vector<8x256xf32> -> vector<8x256xf32>
    %6 = arith.truncf %1 : vector<8x32xf32> to vector<8x32xbf16>
    %c0_7 = arith.constant 0 : index
    %c0_8 = arith.constant 0 : index
    %7 = vector.load %arg5[%c0_7, %c0_8] : memref<32x256xbf16, #tpu.memory_space<vmem>>, vector<32x256xbf16>
    %cst_9 = arith.constant dense<0.000000e+00> : vector<8x256xf32>
    %8 = tpu.matmul %6, %7, %cst_9 {dimension_numbers = #tpu.dot_dimension_numbers<[1], [0], [0], [1], [0, 0, 1, 1], [], []>} : vector<8x32xbf16>, vector<32x256xbf16>, vector<8x256xf32> -> vector<8x256xf32>
    %9 = arith.addf %5, %8 : vector<8x256xf32>
    %10 = arith.truncf %2 : vector<8x32xf32> to vector<8x32xbf16>
    %c0_10 = arith.constant 0 : index
    %c0_11 = arith.constant 0 : index
    %11 = vector.load %arg6[%c0_10, %c0_11] : memref<32x256xbf16, #tpu.memory_space<vmem>>, vector<32x256xbf16>
    %cst_12 = arith.constant dense<0.000000e+00> : vector<8x256xf32>
    %12 = tpu.matmul %10, %11, %cst_12 {dimension_numbers = #tpu.dot_dimension_numbers<[1], [0], [0], [1], [0, 0, 1, 1], [], []>} : vector<8x32xbf16>, vector<32x256xbf16>, vector<8x256xf32> -> vector<8x256xf32>
    %13 = arith.addf %9, %12 : vector<8x256xf32>
    %c0_13 = arith.constant 0 : index
    %c0_14 = arith.constant 0 : index
    %14 = vector.load %arg7[%c0_13, %c0_14] : memref<1x256xf32, #tpu.memory_space<vmem>>, vector<1x256xf32>
    %15 = vector.broadcast %14 : vector<1x256xf32> to vector<8x256xf32>
    %16 = arith.addf %13, %15 : vector<8x256xf32>
    %17 = vector.extract_strided_slice %16 {offsets = [0, 64], sizes = [8, 64], strides = [1, 1]} : vector<8x256xf32> to vector<8x64xf32>
    %cst_15 = arith.constant 5.000000e-01 : f32
    %18 = vector.broadcast %cst_15 : f32 to vector<8x64xf32>
    %19 = arith.mulf %18, %17 : vector<8x64xf32>
    %20 = math.tanh %19 : vector<8x64xf32>
    %cst_16 = arith.constant 5.000000e-01 : f32
    %21 = vector.broadcast %cst_16 : f32 to vector<8x64xf32>
    %22 = arith.mulf %21, %20 : vector<8x64xf32>
    %cst_17 = arith.constant 5.000000e-01 : f32
    %23 = vector.broadcast %cst_17 : f32 to vector<8x64xf32>
    %24 = arith.addf %22, %23 : vector<8x64xf32>
    %25 = vector.extract_strided_slice %24 {offsets = [0, 0], sizes = [8, 32], strides = [1, 1]} : vector<8x64xf32> to vector<8x32xf32>
    %26 = vector.extract_strided_slice %24 {offsets = [0, 32], sizes = [8, 32], strides = [1, 1]} : vector<8x64xf32> to vector<8x32xf32>
    %27 = arith.mulf %25, %1 : vector<8x32xf32>
    %28 = arith.truncf %27 : vector<8x32xf32> to vector<8x32xbf16>
    %29 = arith.mulf %26, %2 : vector<8x32xf32>
    %30 = arith.truncf %29 : vector<8x32xf32> to vector<8x32xbf16>
    %c0_18 = arith.constant 0 : index
    %c0_19 = arith.constant 0 : index
    %31 = vector.load %arg8[%c0_18, %c0_19] : memref<32x256xbf16, #tpu.memory_space<vmem>>, vector<32x256xbf16>
    %cst_20 = arith.constant dense<0.000000e+00> : vector<8x256xf32>
    %32 = tpu.matmul %28, %31, %cst_20 {dimension_numbers = #tpu.dot_dimension_numbers<[1], [0], [0], [1], [0, 0, 1, 1], [], []>} : vector<8x32xbf16>, vector<32x256xbf16>, vector<8x256xf32> -> vector<8x256xf32>
    %c0_21 = arith.constant 0 : index
    %c0_22 = arith.constant 0 : index
    %33 = vector.load %arg9[%c0_21, %c0_22] : memref<32x256xbf16, #tpu.memory_space<vmem>>, vector<32x256xbf16>
    %cst_23 = arith.constant dense<0.000000e+00> : vector<8x256xf32>
    %34 = tpu.matmul %30, %33, %cst_23 {dimension_numbers = #tpu.dot_dimension_numbers<[1], [0], [0], [1], [0, 0, 1, 1], [], []>} : vector<8x32xbf16>, vector<32x256xbf16>, vector<8x256xf32> -> vector<8x256xf32>
    %35 = arith.addf %32, %34 : vector<8x256xf32>
    %36 = arith.addf %16, %35 : vector<8x256xf32>
    %37 = vector.extract_strided_slice %36 {offsets = [0, 0], sizes = [8, 64], strides = [1, 1]} : vector<8x256xf32> to vector<8x64xf32>
    %cst_24 = arith.constant 5.000000e-01 : f32
    %38 = vector.broadcast %cst_24 : f32 to vector<8x64xf32>
    %39 = arith.mulf %38, %37 : vector<8x64xf32>
    %40 = math.tanh %39 : vector<8x64xf32>
    %cst_25 = arith.constant 5.000000e-01 : f32
    %41 = vector.broadcast %cst_25 : f32 to vector<8x64xf32>
    %42 = arith.mulf %41, %40 : vector<8x64xf32>
    %cst_26 = arith.constant 5.000000e-01 : f32
    %43 = vector.broadcast %cst_26 : f32 to vector<8x64xf32>
    %44 = arith.addf %42, %43 : vector<8x64xf32>
    %45 = vector.extract_strided_slice %44 {offsets = [0, 0], sizes = [8, 32], strides = [1, 1]} : vector<8x64xf32> to vector<8x32xf32>
    %46 = vector.extract_strided_slice %44 {offsets = [0, 32], sizes = [8, 32], strides = [1, 1]} : vector<8x64xf32> to vector<8x32xf32>
    %47 = vector.extract_strided_slice %36 {offsets = [0, 128], sizes = [8, 128], strides = [1, 1]} : vector<8x256xf32> to vector<8x128xf32>
    %48 = math.tanh %47 : vector<8x128xf32>
    %49 = vector.extract_strided_slice %48 {offsets = [0, 0], sizes = [8, 32], strides = [1, 1]} : vector<8x128xf32> to vector<8x32xf32>
    %50 = vector.extract_strided_slice %48 {offsets = [0, 32], sizes = [8, 32], strides = [1, 1]} : vector<8x128xf32> to vector<8x32xf32>
    %51 = vector.extract_strided_slice %48 {offsets = [0, 64], sizes = [8, 32], strides = [1, 1]} : vector<8x128xf32> to vector<8x32xf32>
    %52 = vector.extract_strided_slice %48 {offsets = [0, 96], sizes = [8, 32], strides = [1, 1]} : vector<8x128xf32> to vector<8x32xf32>
    %53 = arith.mulf %45, %49 : vector<8x32xf32>
    %cst_27 = arith.constant 1.000000e+00 : f32
    %54 = vector.broadcast %cst_27 : f32 to vector<8x32xf32>
    %55 = arith.subf %54, %45 : vector<8x32xf32>
    %56 = arith.mulf %55, %50 : vector<8x32xf32>
    %57 = arith.addf %53, %56 : vector<8x32xf32>
    %58 = arith.mulf %46, %57 : vector<8x32xf32>
    %cst_28 = arith.constant 1.000000e+00 : f32
    %59 = vector.broadcast %cst_28 : f32 to vector<8x32xf32>
    %60 = arith.subf %59, %46 : vector<8x32xf32>
    %61 = arith.mulf %45, %51 : vector<8x32xf32>
    %cst_29 = arith.constant 1.000000e+00 : f32
    %62 = vector.broadcast %cst_29 : f32 to vector<8x32xf32>
    %63 = arith.subf %62, %45 : vector<8x32xf32>
    %64 = arith.mulf %63, %52 : vector<8x32xf32>
    %65 = arith.addf %61, %64 : vector<8x32xf32>
    %66 = arith.mulf %60, %65 : vector<8x32xf32>
    %67 = arith.addf %58, %66 : vector<8x32xf32>
    %c0_30 = arith.constant 0 : index
    %c0_31 = arith.constant 0 : index
    %68 = vector.load %arg10[%c0_30, %c0_31] : memref<8x32xf32, #tpu.memory_space<vmem>>, vector<8x32xf32>
    tpu.vector_store %arg10[%c0_30, %c0_31], %67 {strides = array<i32>} : memref<8x32xf32, #tpu.memory_space<vmem>>, vector<8x32xf32>,
    return
  }
  func.func @transform_0(%arg0: i32) -> (i32, i32) {
    %c0_i32 = arith.constant 0 : i32
    %c0_i32_0 = arith.constant 0 : i32
    return %arg0, %c0_i32 : i32, i32
  }
  func.func @transform_1(%arg0: i32) -> (i32, i32) {
    %c0_i32 = arith.constant 0 : i32
    %c0_i32_0 = arith.constant 0 : i32
    return %arg0, %c0_i32 : i32, i32
  }
  func.func @transform_2(%arg0: i32) -> (i32, i32) {
    %c0_i32 = arith.constant 0 : i32
    %c0_i32_0 = arith.constant 0 : i32
    return %arg0, %c0_i32 : i32, i32
  }
  func.func @transform_3(%arg0: i32) -> (i32, i32) {
    %c0_i32 = arith.constant 0 : i32
    %c0_i32_0 = arith.constant 0 : i32
    %c0_i32_1 = arith.constant 0 : i32
    return %c0_i32, %c0_i32_0 : i32, i32
  }
  func.func @transform_4(%arg0: i32) -> (i32, i32) {
    %c0_i32 = arith.constant 0 : i32
    %c0_i32_0 = arith.constant 0 : i32
    %c0_i32_1 = arith.constant 0 : i32
    return %c0_i32, %c0_i32_0 : i32, i32
  }
  func.func @transform_5(%arg0: i32) -> (i32, i32) {
    %c0_i32 = arith.constant 0 : i32
    %c0_i32_0 = arith.constant 0 : i32
    %c0_i32_1 = arith.constant 0 : i32
    return %c0_i32, %c0_i32_0 : i32, i32
  }
  func.func @transform_6(%arg0: i32) -> (i32, i32) {
    %c0_i32 = arith.constant 0 : i32
    %c0_i32_0 = arith.constant 0 : i32
    %c0_i32_1 = arith.constant 0 : i32
    return %c0_i32, %c0_i32_0 : i32, i32
  }
  func.func @transform_7(%arg0: i32) -> (i32, i32) {
    %c0_i32 = arith.constant 0 : i32
    %c0_i32_0 = arith.constant 0 : i32
    %c0_i32_1 = arith.constant 0 : i32
    return %c0_i32, %c0_i32_0 : i32, i32
  }
  func.func @transform_8(%arg0: i32) -> (i32, i32) {
    %c0_i32 = arith.constant 0 : i32
    %c0_i32_0 = arith.constant 0 : i32
    %c0_i32_1 = arith.constant 0 : i32
    return %c0_i32, %c0_i32_0 : i32, i32
  }
  func.func @transform_9(%arg0: i32) -> (i32, i32) {
    %c0_i32 = arith.constant 0 : i32
    %c0_i32_0 = arith.constant 0 : i32
    return %arg0, %c0_i32 : i32, i32
  }
}

</mosaic_0001>

<llo_original>
// kernel: gdu_forward.1
$region0: #{gdu_forward.1}
  #allocation0 [shape = 'u32[]', space=smem, size = 0x4, offset = 0x4, fixed_abs, tag = 'smem constant byte address 0x4 - core index']
  #allocation1 [shape = 'u32[72,128]{1,0:T(1,128)}', space=vmem, size = 0x9000, scoped, tag = 'internal scratch']
  %s0 = inlined_call_operand.hbm [shape: f32[8,16], index: 0, kind: input, shape index: {}]
  %s1 = inlined_call_operand.hbm [shape: f32[8,32], index: 1, kind: input, shape index: {}]
  %s2 = inlined_call_operand.hbm [shape: f32[8,32], index: 2, kind: input, shape index: {}]
  %s3 = inlined_call_operand.hbm [shape: bf16[16,256], index: 3, kind: input, shape index: {}]
  %s4 = inlined_call_operand.hbm [shape: bf16[32,256], index: 4, kind: input, shape index: {}]
  %s5 = inlined_call_operand.hbm [shape: bf16[32,256], index: 5, kind: input, shape index: {}]
  %s6 = inlined_call_operand.vmem [shape: f32[1,256], index: 6, kind: input, shape index: {}]
  %s7 = inlined_call_operand.hbm [shape: bf16[32,256], index: 7, kind: input, shape index: {}]
  %s8 = inlined_call_operand.hbm [shape: bf16[32,256], index: 8, kind: input, shape index: {}]
  %s9 = inlined_call_operand.hbm [shape: f32[8,32], index: 9, kind: output, shape index: {}]
  %s10 = sld [smem:[#allocation0]]
  $region78: #{gdu_forward.1} parent=0
    _
  %s12 = ssub.s32 1, %s10
  %s13 = scalar_select 0, %s12, %s10
  $region1: #{gdu_forward.1} parent=0
    #allocation2 [shape = 'u8[4096]{0}', space=vmem, size = 0x1000, scoped, tag = 'input window, operand 0, single buffered']
    #allocation3 [shape = 's32[1]{0}', space=sflag, size = 0x4, scoped, tag = 'scoped memory for gdu_forward.1']
    #allocation4 [shape = 's32[1]{0}', space=sflag, size = 0x4, scoped, tag = 'scoped memory for gdu_forward.1']
    #allocation5 [shape = 'u8[4096]{0}', space=vmem, size = 0x1000, scoped, tag = 'input window, operand 1, single buffered']
    #allocation6 [shape = 's32[1]{0}', space=sflag, size = 0x4, scoped, tag = 'scoped memory for gdu_forward.1']
    #allocation7 [shape = 'u8[4096]{0}', space=vmem, size = 0x1000, scoped, tag = 'input window, operand 2, single buffered']
    #allocation8 [shape = 'u8[8192]{0}', space=vmem, size = 0x2000, scoped, tag = 'input window, operand 3, single buffered']
    #allocation9 [shape = 's32[1]{0}', space=sflag, size = 0x4, scoped, tag = 'scoped memory for gdu_forward.1']
    #allocation10 [shape = 'u8[16384]{0}', space=vmem, size = 0x4000, scoped, tag = 'input window, operand 4, single buffered']
    #allocation11 [shape = 'u8[16384]{0}', space=vmem, size = 0x4000, scoped, tag = 'input window, operand 5, single buffered']
    #allocation12 [shape = 's32[1]{0}', space=sflag, size = 0x4, scoped, tag = 'scoped memory for gdu_forward.1']
    #allocation13 [shape = 'u8[16384]{0}', space=vmem, size = 0x4000, scoped, tag = 'input window, operand 7, single buffered']
    #allocation14 [shape = 'u8[16384]{0}', space=vmem, size = 0x4000, scoped, tag = 'input window, operand 8, single buffered']
    #allocation15 [shape = 's32[1]{0}', space=sflag, size = 0x4, scoped, tag = 'scoped memory for gdu_forward.1']
    #allocation16 [shape = 'u8[4096]{0}', space=vmem, size = 0x1000, scoped, tag = 'output window, operand 0, single buffered']
    %14 = vsyncpa [#allocation3], 0
    %15 = vsyncpa [#allocation6], 0
    %16 = vsyncpa [#allocation9], 0
    %17 = vsyncpa [#allocation12], 0
    %18 = vsyncpa [#allocation15], 0
    %19 = vsyncpa [#allocation4], 0
    // Predicated region
    $region2: #{gdu_forward.1} parent=1 // pred_check
      _
    $region3: #{gdu_forward.1} parent=1 // pred_check_branch
      %21 = sbr.rel (0) target = $region5
    $region4: #{gdu_forward.1} parent=1 // pred_region
      %23 = vsyncadd [#allocation3], 0
      %s25 = sshll.u32 %s0, 4
      %s26 = int_to_ptr.hbm [resolvable:$true] %s25
      %s27 = sshll.u32 [#allocation2], 4
      %s28 = int_to_ptr.vmem [resolvable:$true] %s27
      %30 = dma.hbm_to_vmem [thread:$0]  %s26, 128, %s28, [#allocation3]
    $region5: #{gdu_forward.1} parent=1 // pred_fallthru
      _
    // Predicated region
    $region6: #{gdu_forward.1} parent=1 // pred_check
      _
    $region7: #{gdu_forward.1} parent=1 // pred_check_branch
      %32 = sbr.rel (0) target = $region9
    $region8: #{gdu_forward.1} parent=1 // pred_region
      %34 = vsyncadd [#allocation6], 0
      %s36 = sshll.u32 %s1, 4
      %s37 = int_to_ptr.hbm [resolvable:$true] %s36
      %s38 = sshll.u32 [#allocation5], 4
      %s39 = int_to_ptr.vmem [resolvable:$true] %s38
      %41 = dma.hbm_to_vmem [thread:$0]  %s37, 128, %s39, [#allocation6]
    $region9: #{gdu_forward.1} parent=1 // pred_fallthru
      _
    // Predicated region
    $region10: #{gdu_forward.1} parent=1 // pred_check
      _
    $region11: #{gdu_forward.1} parent=1 // pred_check_branch
      %43 = sbr.rel (0) target = $region13
    $region12: #{gdu_forward.1} parent=1 // pred_region
      %45 = vsyncadd [#allocation6], 0
      %s47 = sshll.u32 %s2, 4
      %s48 = int_to_ptr.hbm [resolvable:$true] %s47
      %s49 = sshll.u32 [#allocation7], 4
      %s50 = int_to_ptr.vmem [resolvable:$true] %s49
      %52 = dma.hbm_to_vmem [thread:$0]  %s48, 128, %s50, [#allocation6]
    $region13: #{gdu_forward.1} parent=1 // pred_fallthru
      _
    // Predicated region
    $region14: #{gdu_forward.1} parent=1 // pred_check
      _
    $region15: #{gdu_forward.1} parent=1 // pred_check_branch
      %54 = sbr.rel (0) target = $region17
    $region16: #{gdu_forward.1} parent=1 // pred_region
      %56 = vsyncadd [#allocation9], 0
      %s57 = sshll.u32 %s3, 4
      %s58 = int_to_ptr.hbm [resolvable:$true] %s57
      %s59 = sshll.u32 [#allocation8], 4
      %s60 = int_to_ptr.vmem [resolvable:$true] %s59
      %65 = dma.hbm_to_vmem [thread:$0]  %s58, 256, %s60, [#allocation9], 128, 128, 8
    $region17: #{gdu_forward.1} parent=1 // pred_fallthru
      _
    // Predicated region
    $region18: #{gdu_forward.1} parent=1 // pred_check
      _
    $region19: #{gdu_forward.1} parent=1 // pred_check_branch
      %67 = sbr.rel (0) target = $region21
    $region20: #{gdu_forward.1} parent=1 // pred_region
      %69 = vsyncadd [#allocation9], 0
      %s70 = sshll.u32 %s4, 4
      %s71 = int_to_ptr.hbm [resolvable:$true] %s70
      %s72 = sshll.u32 [#allocation10], 4
      %s73 = int_to_ptr.vmem [resolvable:$true] %s72
      %78 = dma.hbm_to_vmem [thread:$0]  %s71, 512, %s73, [#allocation9], 128, 128, 8
    $region21: #{gdu_forward.1} parent=1 // pred_fallthru
      _
    // Predicated region
    $region22: #{gdu_forward.1} parent=1 // pred_check
      _
    $region23: #{gdu_forward.1} parent=1 // pred_check_branch
      %80 = sbr.rel (0) target = $region25
    $region24: #{gdu_forward.1} parent=1 // pred_region
      %82 = vsyncadd [#allocation12], 0
      %s83 = sshll.u32 %s5, 4
      %s84 = int_to_ptr.hbm [resolvable:$true] %s83
      %s85 = sshll.u32 [#allocation11], 4
      %s86 = int_to_ptr.vmem [resolvable:$true] %s85
      %91 = dma.hbm_to_vmem [thread:$0]  %s84, 512, %s86, [#allocation12], 128, 128, 8
    $region25: #{gdu_forward.1} parent=1 // pred_fallthru
      _
    // Predicated region
    $region26: #{gdu_forward.1} parent=1 // pred_check
      _
    $region27: #{gdu_forward.1} parent=1 // pred_check_branch
      %93 = sbr.rel (0) target = $region29
    $region28: #{gdu_forward.1} parent=1 // pred_region
      _
    $region29: #{gdu_forward.1} parent=1 // pred_fallthru
      _
    // Predicated region
    $region30: #{gdu_forward.1} parent=1 // pred_check
      _
    $region31: #{gdu_forward.1} parent=1 // pred_check_branch
      %95 = sbr.rel (0) target = $region33
    $region32: #{gdu_forward.1} parent=1 // pred_region
      %97 = vsyncadd [#allocation12], 0
      %s98 = sshll.u32 %s7, 4
      %s99 = int_to_ptr.hbm [resolvable:$true] %s98
      %s100 = sshll.u32 [#allocation13], 4
      %s101 = int_to_ptr.vmem [resolvable:$true] %s100
      %106 = dma.hbm_to_vmem [thread:$0]  %s99, 512, %s101, [#allocation12], 128, 128, 8
    $region33: #{gdu_forward.1} parent=1 // pred_fallthru
      _
    // Predicated region
    $region34: #{gdu_forward.1} parent=1 // pred_check
      _
    $region35: #{gdu_forward.1} parent=1 // pred_check_branch
      %108 = sbr.rel (0) target = $region37
    $region36: #{gdu_forward.1} parent=1 // pred_region
      %110 = vsyncadd [#allocation15], 0
      %s111 = sshll.u32 %s8, 4
      %s112 = int_to_ptr.hbm [resolvable:$true] %s111
      %s113 = sshll.u32 [#allocation14], 4
      %s114 = int_to_ptr.vmem [resolvable:$true] %s113
      %119 = dma.hbm_to_vmem [thread:$0]  %s112, 512, %s114, [#allocation15], 128, 128, 8
    $region37: #{gdu_forward.1} parent=1 // pred_fallthru
      _
    // Predicated region
    $region38: #{gdu_forward.1} parent=1 // pred_check
      _
    $region39: #{gdu_forward.1} parent=1 // pred_check_branch
      %121 = sbr.rel (0) target = $region41
    $region40: #{gdu_forward.1} parent=1 // pred_region
      %123 = dma.done [#allocation3], 128
    $region41: #{gdu_forward.1} parent=1 // pred_fallthru
      _
    // Predicated region
    $region42: #{gdu_forward.1} parent=1 // pred_check
      _
    $region43: #{gdu_forward.1} parent=1 // pred_check_branch
      %125 = sbr.rel (0) target = $region45
    $region44: #{gdu_forward.1} parent=1 // pred_region
      %127 = dma.done [#allocation6], 128
    $region45: #{gdu_forward.1} parent=1 // pred_fallthru
      _
    // Predicated region
    $region46: #{gdu_forward.1} parent=1 // pred_check
      _
    $region47: #{gdu_forward.1} parent=1 // pred_check_branch
      %129 = sbr.rel (0) target = $region49
    $region48: #{gdu_forward.1} parent=1 // pred_region
      %131 = dma.done [#allocation6], 128
    $region49: #{gdu_forward.1} parent=1 // pred_fallthru
      _
    // Predicated region
    $region50: #{gdu_forward.1} parent=1 // pred_check
      _
    $region51: #{gdu_forward.1} parent=1 // pred_check_branch
      %133 = sbr.rel (0) target = $region53
    $region52: #{gdu_forward.1} parent=1 // pred_region
      %135 = dma.done [#allocation9], 256
    $region53: #{gdu_forward.1} parent=1 // pred_fallthru
      _
    // Predicated region
    $region54: #{gdu_forward.1} parent=1 // pred_check
      _
    $region55: #{gdu_forward.1} parent=1 // pred_check_branch
      %137 = sbr.rel (0) target = $region57
    $region56: #{gdu_forward.1} parent=1 // pred_region
      %139 = dma.done [#allocation9], 512
    $region57: #{gdu_forward.1} parent=1 // pred_fallthru
      _
    // Predicated region
    $region58: #{gdu_forward.1} parent=1 // pred_check
      _
    $region59: #{gdu_forward.1} parent=1 // pred_check_branch
      %141 = sbr.rel (0) target = $region61
    $region60: #{gdu_forward.1} parent=1 // pred_region
      %143 = dma.done [#allocation12], 512
    $region61: #{gdu_forward.1} parent=1 // pred_fallthru
      _
    // Predicated region
    $region62: #{gdu_forward.1} parent=1 // pred_check
      _
    $region63: #{gdu_forward.1} parent=1 // pred_check_branch
      %145 = sbr.rel (0) target = $region65
    $region64: #{gdu_forward.1} parent=1 // pred_region
      %147 = dma.done [#allocation12], 512
    $region65: #{gdu_forward.1} parent=1 // pred_fallthru
      _
    // Predicated region
    $region66: #{gdu_forward.1} parent=1 // pred_check
      _
    $region67: #{gdu_forward.1} parent=1 // pred_check_branch
      %149 = sbr.rel (0) target = $region69
    $region68: #{gdu_forward.1} parent=1 // pred_region
      %151 = dma.done [#allocation15], 512
    $region69: #{gdu_forward.1} parent=1 // pred_fallthru
      _
    %v153 = vld [vmem:[#allocation2] sm:$0xff]
    %v154 = vld [vmem:[#allocation5] sm:$0xff]
    %v155 = vld [vmem:[#allocation7] sm:$0xff]
    %v156 = vpack.c.bf16 %v153, %v153
    %v157 = vld [vmem:[#allocation8] sm:$0xff]
    %v158 = vld [vmem:[#allocation8 + $0x8] sm:$0xff]
    %v159 = vpack.c.bf16 %v154, %v154
    %v160 = vld [vmem:[#allocation10] sm:$0xff]
    %v161 = vld [vmem:[#allocation10 + $0x8] sm:$0xff]
    %v162 = vld [vmem:[#allocation10 + $0x10] sm:$0xff]
    %v163 = vld [vmem:[#allocation10 + $0x18] sm:$0xff]
    %v168 = vunpack.c.l.b16 %v160
    %v169 = vunpack.c.h.b16 %v160
    %v170 = vunpack.c.l.b16 %v161
    %v171 = vunpack.c.h.b16 %v161
    %v172 = vunpack.c.l.b16 %v162
    %v173 = vunpack.c.h.b16 %v162
    %v174 = vunpack.c.l.b16 %v163
    %v175 = vunpack.c.h.b16 %v163
    %v176 = vpack.c.b16 %v170, %v168
    %v177 = vpack.c.b16 %v171, %v169
    %v178 = vpack.c.b16 %v174, %v172
    %v179 = vpack.c.b16 %v175, %v173
    %vm184 = vcmask 261120
    %v186 = vsel %vm184, %v159, 0
    %188 = vmatpush.bf16.msra.mxu0 0
    %189 = vmatpush.bf16.msra.mxu0 0
    %190 = vmatpush.bf16.msra.mxu0 0
    %191 = vmatpush.bf16.msra.mxu0 0
    %192 = vmatpush.bf16.msra.mxu0 0
    %193 = vmatpush.bf16.msra.mxu0 0
    %194 = vmatpush.bf16.msra.mxu0 %v178
    %195 = vmatpush.bf16.msra.mxu0 %v176
    %196 = vmatmul.bf16.gmra.mxu0 %v186
    %v197 = vpop.f32.mrf.mxu0
    %v198 = vadd.f32 0.0, %v197
    %v199 = vpop.f32.mrf.mxu0
    %200 = vdwg.mxu0
    %201 = vmatpush.bf16.msra.mxu0 0
    %202 = vmatpush.bf16.msra.mxu0 0
    %203 = vmatpush.bf16.msra.mxu0 0
    %204 = vmatpush.bf16.msra.mxu0 0
    %205 = vmatpush.bf16.msra.mxu0 0
    %206 = vmatpush.bf16.msra.mxu0 0
    %207 = vmatpush.bf16.msra.mxu0 %v179
    %208 = vmatpush.bf16.msra.mxu0 %v177
    %209 = vmatmul.bf16.gmra.mxu0 %v186
    %v210 = vpop.f32.mrf.mxu0
    %v211 = vadd.f32 0.0, %v210
    %v212 = vpop.f32.mrf.mxu0
    %213 = vdwg.mxu0
    %v216 = vunpack.c.l.b16 %v157
    %v217 = vunpack.c.h.b16 %v157
    %v218 = vunpack.c.l.b16 %v158
    %v219 = vunpack.c.h.b16 %v158
    %v220 = vpack.c.b16 %v218, %v216
    %v221 = vpack.c.b16 %v219, %v217
    %vm224 = vcmask 130048
    %v226 = vsel %vm224, %v156, 0
    %228 = vmatpush.bf16.msra.mxu0 0
    %229 = vmatpush.bf16.msra.mxu0 0
    %230 = vmatpush.bf16.msra.mxu0 0
    %231 = vmatpush.bf16.msra.mxu0 0
    %232 = vmatpush.bf16.msra.mxu0 0
    %233 = vmatpush.bf16.msra.mxu0 0
    %234 = vmatpush.bf16.msra.mxu0 0
    %235 = vmatpush.bf16.msra.mxu0 %v220
    %236 = vmatmul.bf16.gmra.mxu0 %v226
    %v237 = vpop.f32.mrf.mxu0
    %v238 = vadd.f32 %v198, %v237
    %v239 = vpop.f32.mrf.mxu0
    %240 = vdwg.mxu0
    %241 = vmatpush.bf16.msra.mxu0 0
    %242 = vmatpush.bf16.msra.mxu0 0
    %243 = vmatpush.bf16.msra.mxu0 0
    %244 = vmatpush.bf16.msra.mxu0 0
    %245 = vmatpush.bf16.msra.mxu0 0
    %246 = vmatpush.bf16.msra.mxu0 0
    %247 = vmatpush.bf16.msra.mxu0 0
    %248 = vmatpush.bf16.msra.mxu0 %v221
    %249 = vmatmul.bf16.gmra.mxu0 %v226
    %v250 = vpop.f32.mrf.mxu0
    %v251 = vadd.f32 %v211, %v250
    %v252 = vpop.f32.mrf.mxu0
    %253 = vdwg.mxu0
    %v254 = vpack.c.bf16 %v155, %v155
    %v255 = vld [vmem:[#allocation11] sm:$0xff]
    %v256 = vld [vmem:[#allocation11 + $0x8] sm:$0xff]
    %v257 = vld [vmem:[#allocation11 + $0x10] sm:$0xff]
    %v258 = vld [vmem:[#allocation11 + $0x18] sm:$0xff]
    %v263 = vunpack.c.l.b16 %v255
    %v264 = vunpack.c.h.b16 %v255
    %v265 = vunpack.c.l.b16 %v256
    %v266 = vunpack.c.h.b16 %v256
    %v267 = vunpack.c.l.b16 %v257
    %v268 = vunpack.c.h.b16 %v257
    %v269 = vunpack.c.l.b16 %v258
    %v270 = vunpack.c.h.b16 %v258
    %v271 = vpack.c.b16 %v265, %v263
    %v272 = vpack.c.b16 %v266, %v264
    %v273 = vpack.c.b16 %v269, %v267
    %v274 = vpack.c.b16 %v270, %v268
    %v280 = vsel %vm184, %v254, 0
    %282 = vmatpush.bf16.msra.mxu0 0
    %283 = vmatpush.bf16.msra.mxu0 0
    %284 = vmatpush.bf16.msra.mxu0 0
    %285 = vmatpush.bf16.msra.mxu0 0
    %286 = vmatpush.bf16.msra.mxu0 0
    %287 = vmatpush.bf16.msra.mxu0 0
    %288 = vmatpush.bf16.msra.mxu0 %v273
    %289 = vmatpush.bf16.msra.mxu0 %v271
    %290 = vmatmul.bf16.gmra.mxu0 %v280
    %v291 = vpop.f32.mrf.mxu0
    %v292 = vadd.f32 0.0, %v291
    %v293 = vpop.f32.mrf.mxu0
    %294 = vdwg.mxu0
    %295 = vmatpush.bf16.msra.mxu0 0
    %296 = vmatpush.bf16.msra.mxu0 0
    %297 = vmatpush.bf16.msra.mxu0 0
    %298 = vmatpush.bf16.msra.mxu0 0
    %299 = vmatpush.bf16.msra.mxu0 0
    %300 = vmatpush.bf16.msra.mxu0 0
    %301 = vmatpush.bf16.msra.mxu0 %v274
    %302 = vmatpush.bf16.msra.mxu0 %v272
    %303 = vmatmul.bf16.gmra.mxu0 %v280
    %v304 = vpop.f32.mrf.mxu0
    %v305 = vadd.f32 0.0, %v304
    %v306 = vpop.f32.mrf.mxu0
    %307 = vdwg.mxu0
    %v308 = vadd.f32 %v238, %v292
    %v309 = vadd.f32 %v251, %v305
    %v310 = vld [vmem:[%s6] sm:$0x3]
    %v312 = vperm.slane %v310, 0
    %v313 = vperm.slane %v310, 1
    %v316 = vadd.f32 %v308, %v312
    %v317 = vadd.f32 %v309, %v313
    %v318 = vmul.f32 %v316, 0.5
    %v319 = vtanh.pop %v318
    %v320 = vmul.f32 %v319, 0.5
    %v321 = vadd.f32 %v320, 0.5
    %323 = vrot.lane.b32.xlu0 %v154, 64
    %v324 = vpop.permute.xlu0 %323
    %v326 = vmul.f32 %v321, %v324
    %v327 = vpack.c.bf16 %v326, %v326
    %329 = vrot.lane.b32.xlu0 %v155, 96
    %v330 = vpop.permute.xlu0 %329
    %v332 = vmul.f32 %v321, %v330
    %v333 = vpack.c.bf16 %v332, %v332
    %v334 = vld [vmem:[#allocation13] sm:$0xff]
    %v335 = vld [vmem:[#allocation13 + $0x8] sm:$0xff]
    %v336 = vld [vmem:[#allocation13 + $0x10] sm:$0xff]
    %v337 = vld [vmem:[#allocation13 + $0x18] sm:$0xff]
    %v338 = vld [vmem:[#allocation14] sm:$0xff]
    %v339 = vld [vmem:[#allocation14 + $0x8] sm:$0xff]
    %v340 = vld [vmem:[#allocation14 + $0x10] sm:$0xff]
    %v341 = vld [vmem:[#allocation14 + $0x18] sm:$0xff]
    %343 = vrot.lane.b32.xlu0 %v333, 32
    %v344 = vpop.permute.xlu0 %343
    %v349 = vunpack.c.l.b16 %v338
    %v350 = vunpack.c.h.b16 %v338
    %v351 = vunpack.c.l.b16 %v339
    %v352 = vunpack.c.h.b16 %v339
    %v353 = vunpack.c.l.b16 %v340
    %v354 = vunpack.c.h.b16 %v340
    %v355 = vunpack.c.l.b16 %v341
    %v356 = vunpack.c.h.b16 %v341
    %v357 = vpack.c.b16 %v351, %v349
    %v358 = vpack.c.b16 %v352, %v350
    %v359 = vpack.c.b16 %v355, %v353
    %v360 = vpack.c.b16 %v356, %v354
    %v366 = vsel %vm184, %v344, 0
    %368 = vmatpush.bf16.msra.mxu0 0
    %369 = vmatpush.bf16.msra.mxu0 0
    %370 = vmatpush.bf16.msra.mxu0 0
    %371 = vmatpush.bf16.msra.mxu0 0
    %372 = vmatpush.bf16.msra.mxu0 0
    %373 = vmatpush.bf16.msra.mxu0 0
    %374 = vmatpush.bf16.msra.mxu0 %v359
    %375 = vmatpush.bf16.msra.mxu0 %v357
    %376 = vmatmul.bf16.gmra.mxu0 %v366
    %v377 = vpop.f32.mrf.mxu0
    %v378 = vadd.f32 0.0, %v377
    %v379 = vpop.f32.mrf.mxu0
    %380 = vdwg.mxu0
    %381 = vmatpush.bf16.msra.mxu0 0
    %382 = vmatpush.bf16.msra.mxu0 0
    %383 = vmatpush.bf16.msra.mxu0 0
    %384 = vmatpush.bf16.msra.mxu0 0
    %385 = vmatpush.bf16.msra.mxu0 0
    %386 = vmatpush.bf16.msra.mxu0 0
    %387 = vmatpush.bf16.msra.mxu0 %v360
    %388 = vmatpush.bf16.msra.mxu0 %v358
    %389 = vmatmul.bf16.gmra.mxu0 %v366
    %v390 = vpop.f32.mrf.mxu0
    %v391 = vadd.f32 0.0, %v390
    %v392 = vpop.f32.mrf.mxu0
    %393 = vdwg.mxu0
    %395 = vrot.lane.b32.xlu0 %v327, 64
    %v396 = vpop.permute.xlu0 %395
    %v401 = vunpack.c.l.b16 %v334
    %v402 = vunpack.c.h.b16 %v334
    %v403 = vunpack.c.l.b16 %v335
    %v404 = vunpack.c.h.b16 %v335
    %v405 = vunpack.c.l.b16 %v336
    %v406 = vunpack.c.h.b16 %v336
    %v407 = vunpack.c.l.b16 %v337
    %v408 = vunpack.c.h.b16 %v337
    %v409 = vpack.c.b16 %v403, %v401
    %v410 = vpack.c.b16 %v404, %v402
    %v411 = vpack.c.b16 %v407, %v405
    %v412 = vpack.c.b16 %v408, %v406
    %v418 = vsel %vm184, %v396, 0
    %420 = vmatpush.bf16.msra.mxu0 0
    %421 = vmatpush.bf16.msra.mxu0 0
    %422 = vmatpush.bf16.msra.mxu0 0
    %423 = vmatpush.bf16.msra.mxu0 0
    %424 = vmatpush.bf16.msra.mxu0 0
    %425 = vmatpush.bf16.msra.mxu0 0
    %426 = vmatpush.bf16.msra.mxu0 %v411
    %427 = vmatpush.bf16.msra.mxu0 %v409
    %428 = vmatmul.bf16.gmra.mxu0 %v418
    %v429 = vpop.f32.mrf.mxu0
    %v430 = vadd.f32 %v378, %v429
    %v431 = vpop.f32.mrf.mxu0
    %432 = vdwg.mxu0
    %433 = vmatpush.bf16.msra.mxu0 0
    %434 = vmatpush.bf16.msra.mxu0 0
    %435 = vmatpush.bf16.msra.mxu0 0
    %436 = vmatpush.bf16.msra.mxu0 0
    %437 = vmatpush.bf16.msra.mxu0 0
    %438 = vmatpush.bf16.msra.mxu0 0
    %439 = vmatpush.bf16.msra.mxu0 %v412
    %440 = vmatpush.bf16.msra.mxu0 %v410
    %441 = vmatmul.bf16.gmra.mxu0 %v418
    %v442 = vpop.f32.mrf.mxu0
    %v443 = vadd.f32 %v391, %v442
    %v444 = vpop.f32.mrf.mxu0
    %445 = vdwg.mxu0
    %v446 = vadd.f32 %v316, %v430
    %v447 = vadd.f32 %v317, %v443
    %v448 = vmul.f32 %v446, 0.5
    %v449 = vtanh.pop %v448
    %v450 = vmul.f32 %v449, 0.5
    %v451 = vadd.f32 %v450, 0.5
    %v452 = vtanh.pop %v447
    %v453 = vmul.f32 %v451, %v452
    %v454 = vsub.f32 1.0, %v451
    %456 = vrot.lane.b32.xlu0 %v452, 96
    %v457 = vpop.permute.xlu0 %456
    %v459 = vmul.f32 %v454, %v457
    %v460 = vadd.f32 %v453, %v459
    %462 = vrot.lane.b32.xlu0 %v460, 32
    %v463 = vpop.permute.xlu0 %462
    %v465 = vmul.f32 %v451, %v463
    %466 = vrot.lane.b32.xlu0 %v452, 64
    %v467 = vpop.permute.xlu0 %466
    %v469 = vmul.f32 %v451, %v467
    %470 = vrot.lane.b32.xlu0 %v452, 32
    %v471 = vpop.permute.xlu0 %470
    %v473 = vmul.f32 %v454, %v471
    %v474 = vadd.f32 %v469, %v473
    %476 = vrot.lane.b32.xlu0 %v474, 32
    %v477 = vpop.permute.xlu0 %476
    %v479 = vmul.f32 %v454, %v477
    %v480 = vadd.f32 %v465, %v479
    %482 = vrot.lane.b32.xlu0 %v480, 96
    %v483 = vpop.permute.xlu0 %482
    %485 = vst.msk [vmem:[#allocation16] sm:$0xff] %vm184, %v483
    // Predicated region
    $region70: #{gdu_forward.1} parent=1 // pred_check
      _
    $region71: #{gdu_forward.1} parent=1 // pred_check_branch
      %487 = sbr.rel (0) target = $region73
    $region72: #{gdu_forward.1} parent=1 // pred_region
      %489 = vsyncadd [#allocation4], 0
      %s491 = sshll.u32 [#allocation16], 4
      %s492 = int_to_ptr.vmem [resolvable:$true] %s491
      %s493 = sshll.u32 %s9, 4
      %s494 = int_to_ptr.hbm [resolvable:$true] %s493
      %496 = dma.vmem_to_hbm [thread:$0]  %s492, 128, %s494, [#allocation4]
    $region73: #{gdu_forward.1} parent=1 // pred_fallthru
      _
    // Predicated region
    $region74: #{gdu_forward.1} parent=1 // pred_check
      _
    $region75: #{gdu_forward.1} parent=1 // pred_check_branch
      %498 = sbr.rel (0) target = $region77
    $region76: #{gdu_forward.1} parent=1 // pred_region
      %500 = dma.done [#allocation4], 128
    $region77: #{gdu_forward.1} parent=1 // pred_fallthru
      _
    %501 = vsyncpa [#allocation3], 1
    %502 = vsyncpa [#allocation6], 1
    %503 = vsyncpa [#allocation9], 1
    %504 = vsyncpa [#allocation12], 1
    %505 = vsyncpa [#allocation15], 1
    %506 = vsyncpa [#allocation4], 1

</llo_original>
